<compile_context>
chip_gen: v5e
topology: v5e:2x2
jax: 0.10.0
libtpu: 0.0.40
codegen_flags: <defaults>
</compile_context>

<pallas_src>
import functools

import jax
import jax.numpy as jnp
import numpy as np
from jax.experimental import pallas as pl
from jax.experimental.pallas import tpu as pltpu

PAD_ID = 0          # tokenizer.pad_token_id
CLS_ID = 101        # tokenizer.cls_token id
SEP_ID = 102        # tokenizer.sep_token id
IGNORE_LABEL = 100  # labels != 100 condition
LANE = 128


def _round_up(x, m):
    return (x + m - 1) // m * m


def _tcrf_kernel(seq_ref, w_ref, b_ref, mask_ref, lab_ref,
                 prob_ref, loss_ref, *, num_labels, tile_rows, num_rows):
    # seq_ref:  [TM, H]  f32   flattened (B*S) rows of sequence_output
    # w_ref:    [H, Lp]  bf16  hidden2tag W^T, zero-padded to Lp=128 lanes
    # b_ref:    [1, Lp]  f32   hidden2tag bias, padded lanes are 0
    # mask_ref: [TM, 1]  f32   semantic mask (pad/cls/sep/label!=100)
    # lab_ref:  [TM, 1]  i32   masked integer labels
    # prob_ref: [TM, L]  f32   relu(hidden2tag(seq)) for the real label lanes
    # loss_ref: [1,1,1]  f32   per-tile CE sum
    mask_f = mask_ref[...]

    # Cast to bf16 in-kernel (no extra wrapper HBM pass) and run hidden2tag on
    # the MXU.  (seq*mask) @ W == (seq @ W) * mask for a 0/1 per-row mask, so
    # the mask is applied to the [TM, Lp] logits, not the [TM, H] activations.
    seq_bf = seq_ref[...].astype(jnp.bfloat16)
    logits = jnp.dot(seq_bf, w_ref[...],
                     preferred_element_type=jnp.float32)          # [TM, Lp] f32
    probs = jnp.maximum(logits * mask_f + b_ref[...], 0.0)        # relu(hidden2tag)
    prob_ref[...] = probs[:, :num_labels]                         # only real lanes

    probs_m = probs * mask_f                                      # probablities_masked
    tm, lp = probs_m.shape

    # Row validity of this tile (tile-padding rows), computed in-kernel.
    row = (pl.program_id(0) * tile_rows
           + jax.lax.broadcasted_iota(jnp.int32, (tm, 1), 0))
    rowv = (row < num_rows).astype(jnp.float32)

    # CrossEntropy with hard labels over the real L lanes.  Padded lanes of
    # probs_m are exactly 0 and every real lane is >= 0 post-ReLU, so the
    # all-lane max equals the real-lane max and the padded lanes contribute
    # exactly (Lp - L) * exp(-mx) to the exp-sum: subtract it instead of
    # masking with an iota/where pass.
    mx = jnp.max(probs_m, axis=-1, keepdims=True)
    sum_all = jnp.sum(jnp.exp(probs_m - mx), axis=-1, keepdims=True)
    sum_real = sum_all - float(lp - num_labels) * jnp.exp(-mx)
    lse = jnp.log(sum_real) + mx

    col = jax.lax.broadcasted_iota(jnp.int32, (tm, lp), 1)
    onehot = (lab_ref[...] == col).astype(jnp.float32)
    picked = jnp.sum(probs_m * onehot, axis=-1, keepdims=True)
    ce = (lse - picked) * rowv                                    # [TM, 1]

    # Per-tile CE sum (wrapper divides by the true B*S row count).
    loss_ref[...] = jnp.sum(ce).reshape(1, 1, 1)


def transformer_crf_forward(input_ids, labels, sequence_output, w_ht, b_ht,
                            *, row_tile=2048):
    """Mirrors TRANSFORMERCRF.forward (mode='test' / hard-label path)."""
    B, S = input_ids.shape
    H = sequence_output.shape[-1]
    L = w_ht.shape[-1]
    Lp = max(LANE, _round_up(L, LANE))

    BS = B * S
    TM = min(row_tile, _round_up(BS, 8))
    # Prefer >= 2 row tiles so both TensorCores are used on megacore parts (v7x).
    if _round_up(BS, TM) // TM < 2 and BS >= 16:
        TM = _round_up((BS + 1) // 2, 8)
    BSp = _round_up(BS, TM)
    n_tiles = BSp // TM
    pad_rows = BSp - BS

    ids_f = input_ids.astype(jnp.int32).reshape(BS)
    lab_f = labels.astype(jnp.int32).reshape(BS)

    # mask = (ids != pad) & (ids != cls) & (ids != sep) & (labels != 100)
    mask = ((ids_f != PAD_ID) & (ids_f != CLS_ID) &
            (ids_f != SEP_ID) & (lab_f != IGNORE_LABEL))          # [BS] bool

    mask_f = mask.astype(jnp.float32)
    lab_m = lab_f * mask.astype(jnp.int32)
    seq = sequence_output.reshape(BS, H)                          # native dtype, no copy

    if pad_rows:
        mask_f = jnp.pad(mask_f, (0, pad_rows))
        lab_m = jnp.pad(lab_m, (0, pad_rows))
        seq = jnp.pad(seq, ((0, pad_rows), (0, 0)))
    mask_f = mask_f.reshape(BSp, 1)
    lab_m = lab_m.reshape(BSp, 1)

    w = jnp.pad(w_ht.astype(jnp.bfloat16), ((0, 0), (0, Lp - L))) # [H, Lp] bf16
    b = jnp.pad(b_ht.astype(jnp.float32), (0, Lp - L)).reshape(1, Lp)

    kern = functools.partial(_tcrf_kernel, num_labels=L,
                             tile_rows=TM, num_rows=BS)

    probs_p, loss_t = pl.pallas_call(
        kern,
        grid=(n_tiles,),
        in_specs=[
            pl.BlockSpec((TM, H), lambda i: (i, 0)),   # sequence_output rows (f32)
            pl.BlockSpec((H, Lp), lambda i: (0, 0)),   # hidden2tag W^T (bf16, padded)
            pl.BlockSpec((1, Lp), lambda i: (0, 0)),   # hidden2tag bias (padded)
            pl.BlockSpec((TM, 1), lambda i: (i, 0)),   # semantic mask (f32)
            pl.BlockSpec((TM, 1), lambda i: (i, 0)),   # masked labels (i32)
        ],
        out_specs=[
            pl.BlockSpec((TM, L), lambda i: (i, 0)),       # probabilities (L lanes)
            pl.BlockSpec((1, 1, 1), lambda i: (i, 0, 0)),  # per-tile CE sum
        ],
        out_shape=[
            jax.ShapeDtypeStruct((BSp, L), jnp.float32),
            jax.ShapeDtypeStruct((n_tiles, 1, 1), jnp.float32),
        ],
        compiler_params=pltpu.CompilerParams(
            dimension_semantics=("parallel",)),
    )(seq, w, b, mask_f, lab_m)

    # cumulative_loss / B == total CE sum / (B*S) since every batch has S positions.
    average_loss = (jnp.sum(loss_t) / (B * S)).reshape(1)
    probs = probs_p[:BS].reshape(B, S, L)
    mask_bs = mask.reshape(B, S)
    prob_mask_expanded = jnp.broadcast_to(mask_bs[..., None], probs.shape)
    # ('test' mode return): (avg_loss, probs, prob_mask_expanded, labels, mask, mask)
    return average_loss, probs, prob_mask_expanded, labels, mask_bs, mask_bs


def _reference(input_ids, labels, seq_out, w_ht, b_ht):
    """Pure-JAX reference of the same forward semantics (bf16 matmul inputs)."""
    mask = ((input_ids != PAD_ID) & (input_ids != CLS_ID) &
            (input_ids != SEP_ID) & (labels != IGNORE_LABEL))
    mf = mask.astype(jnp.float32)[..., None]
    seq_m = (seq_out * mf).astype(jnp.bfloat16)
    logits = jnp.dot(seq_m, w_ht.astype(jnp.bfloat16),
                     preferred_element_type=jnp.float32) + b_ht
    probs = jax.nn.relu(logits)
    probs_m = probs * mf
    lab_m = labels * mask.astype(labels.dtype)
    lse = jax.scipy.special.logsumexp(probs_m, axis=-1)
    picked = jnp.take_along_axis(probs_m, lab_m[..., None], axis=-1)[..., 0]
    ce = lse - picked
    avg = jnp.mean(ce).reshape(1)   # == per-batch mean then / B (equal S per batch)
    return avg, probs, mask


if __name__ == "__main__":
    B, S, H, L = 2, 8, 768, 4          # 768 matches nn.Linear(768, num_labels)
    key = jax.random.PRNGKey(0)
    k_tok, k_lab, k_emb, k_w, k_b = jax.random.split(key, 5)

    # Deterministic token ids: [CLS, tok..., SEP, PAD]
    body = jax.random.randint(k_tok, (B, S - 3), 1000, 2000, dtype=jnp.int32)
    input_ids = jnp.concatenate(
        [jnp.full((B, 1), CLS_ID, jnp.int32), body,
         jnp.full((B, 1), SEP_ID, jnp.int32), jnp.zeros((B, 1), jnp.int32)],
        axis=1)
    labels = jax.random.randint(k_lab, (B, S), 0, L, dtype=jnp.int32)

    # TODO(synk): the pretrained HF transformer backbone (`self.transformer_layer`,
    # an external module passed to __init__) is stubbed by a deterministic embedding
    # lookup producing sequence_output = outputs[0] with hidden size 768.
    emb_table = jax.random.normal(k_emb, (2048, H), jnp.float32) * 0.02
    sequence_output = jnp.take(emb_table, input_ids, axis=0)      # [B, S, H]

    # hidden2tag = nn.Linear(768, num_labels): weight [L, H] -> stored as [H, L]
    w_ht = (jax.random.normal(k_w, (L, H), jnp.float32) * 0.02).T
    b_ht = jax.random.normal(k_b, (L,), jnp.float32) * 0.01

    outs = transformer_crf_forward(input_ids, labels, sequence_output, w_ht, b_ht)
    outs = jax.block_until_ready(outs)
    avg_loss, probs, pmask_exp, labels_out, mask_out, mask_out2 = outs

    ref_loss, ref_probs, ref_mask = _reference(
        input_ids, labels, sequence_output, w_ht, b_ht)
    np.testing.assert_allclose(np.asarray(avg_loss), np.asarray(ref_loss),
                               rtol=1e-3, atol=1e-4)
    np.testing.assert_allclose(np.asarray(probs), np.asarray(ref_probs),
                               rtol=1e-3, atol=1e-4)
    np.testing.assert_array_equal(np.asarray(mask_out), np.asarray(ref_mask))

    print("KERNEL_OK")
</pallas_src>

<mosaic_0001>
module attributes {stable_mosaic.version = 11 : i64} {
  func.func @_tcrf_kernel(%arg0: i32, %arg1: memref<8x768xf32, #tpu.memory_space<vmem>>, %arg2: memref<768x128xbf16, #tpu.memory_space<vmem>>, %arg3: memref<1x128xf32, #tpu.memory_space<vmem>>, %arg4: memref<8x1xf32, #tpu.memory_space<vmem>>, %arg5: memref<8x1xi32, #tpu.memory_space<vmem>>, %arg6: memref<8x4xf32, #tpu.memory_space<vmem>>, %arg7: memref<1x1x1xf32, #tpu.memory_space<vmem>>) attributes {dimension_semantics = [#tpu.dimension_semantics<parallel>], iteration_bounds = array<i64: 2>, scalar_prefetch = 0 : i64, scratch_operands = 0 : i64, tpu.core_type = #tpu.core_type<tc>, window_params = [{transform_indices = @transform_0, window_bounds = array<i64: 8, 768>}, {pipeline_mode = #tpu.pipeline_mode<synchronous>, transform_indices = @transform_1, window_bounds = array<i64: 768, 128>}, {pipeline_mode = #tpu.pipeline_mode<synchronous>, transform_indices = @transform_2, window_bounds = array<i64: 1, 128>}, {transform_indices = @transform_3, window_bounds = array<i64: 8, 1>}, {transform_indices = @transform_4, window_bounds = array<i64: 8, 1>}, {transform_indices = @transform_5, window_bounds = array<i64: 8, 4>}, {transform_indices = @transform_6, window_bounds = array<i64: 1, 1, 1>}]} {
    %c0 = arith.constant 0 : index
    %c0_0 = arith.constant 0 : index
    %0 = vector.load %arg4[%c0, %c0_0] : memref<8x1xf32, #tpu.memory_space<vmem>>, vector<8x1xf32>
    %c0_1 = arith.constant 0 : index
    %c0_2 = arith.constant 0 : index
    %1 = vector.load %arg1[%c0_1, %c0_2] : memref<8x768xf32, #tpu.memory_space<vmem>>, vector<8x768xf32>
    %2 = arith.truncf %1 : vector<8x768xf32> to vector<8x768xbf16>
    %c0_3 = arith.constant 0 : index
    %c0_4 = arith.constant 0 : index
    %3 = vector.load %arg2[%c0_3, %c0_4] : memref<768x128xbf16, #tpu.memory_space<vmem>>, vector<768x128xbf16>
    %cst = arith.constant dense<0.000000e+00> : vector<8x128xf32>
    %4 = tpu.matmul %2, %3, %cst {dimension_numbers = #tpu.dot_dimension_numbers<[1], [0], [0], [1], [0, 0, 1, 1], [], []>} : vector<8x768xbf16>, vector<768x128xbf16>, vector<8x128xf32> -> vector<8x128xf32>
    %5 = vector.broadcast %0 : vector<8x1xf32> to vector<8x128xf32>
    %6 = arith.mulf %4, %5 : vector<8x128xf32>
    %c0_5 = arith.constant 0 : index
    %c0_6 = arith.constant 0 : index
    %7 = vector.load %arg3[%c0_5, %c0_6] : memref<1x128xf32, #tpu.memory_space<vmem>>, vector<1x128xf32>
    %8 = vector.broadcast %7 : vector<1x128xf32> to vector<8x128xf32>
    %9 = arith.addf %6, %8 : vector<8x128xf32>
    %cst_7 = arith.constant 0.000000e+00 : f32
    %10 = vector.broadcast %cst_7 : f32 to vector<8x128xf32>
    %11 = arith.maximumf %9, %10 : vector<8x128xf32>
    %12 = vector.extract_strided_slice %11 {offsets = [0, 0], sizes = [8, 4], strides = [1, 1]} : vector<8x128xf32> to vector<8x4xf32>
    %c0_8 = arith.constant 0 : index
    %c0_9 = arith.constant 0 : index
    %13 = vector.load %arg6[%c0_8, %c0_9] : memref<8x4xf32, #tpu.memory_space<vmem>>, vector<8x4xf32>
    tpu.vector_store %arg6[%c0_8, %c0_9], %12 {strides = array<i32>} : memref<8x4xf32, #tpu.memory_space<vmem>>, vector<8x4xf32>,
    %14 = vector.broadcast %0 : vector<8x1xf32> to vector<8x128xf32>
    %15 = arith.mulf %11, %14 : vector<8x128xf32>
    %c8_i32 = arith.constant 8 : i32
    %16 = arith.muli %arg0, %c8_i32 : i32
    %17 = tpu.iota {dimensions = array<i32: 0>} : vector<8x1xi32>
    %18 = vector.broadcast %16 : i32 to vector<8x1xi32>
    %19 = arith.addi %18, %17 : vector<8x1xi32>
    %c16_i32 = arith.constant 16 : i32
    %20 = vector.broadcast %c16_i32 : i32 to vector<8x1xi32>
    %21 = arith.cmpi slt, %19, %20 : vector<8x1xi32>
    %22 = arith.extui %21 : vector<8x1xi1> to vector<8x1xi32>
    %23 = arith.sitofp %22 : vector<8x1xi32> to vector<8x1xf32>
    %cst_10 = arith.constant dense<0xFF800000> : vector<8xf32>
    %24 = vector.multi_reduction <maximumf>, %15, %cst_10 [1] : vector<8x128xf32> to vector<8xf32>
    %25 = vector.shape_cast %24 : vector<8xf32> to vector<8x1xf32>
    %26 = vector.broadcast %25 : vector<8x1xf32> to vector<8x128xf32>
    %27 = arith.subf %15, %26 : vector<8x128xf32>
    %28 = math.exp %27 : vector<8x128xf32>
    %cst_11 = arith.constant dense<0.000000e+00> : vector<8xf32>
    %29 = vector.multi_reduction <add>, %28, %cst_11 [1] : vector<8x128xf32> to vector<8xf32>
    %30 = vector.shape_cast %29 : vector<8xf32> to vector<8x1xf32>
    %cst_12 = arith.constant 0.000000e+00 : f32
    %31 = vector.broadcast %cst_12 : f32 to vector<8x1xf32>
    %32 = arith.subf %31, %25 : vector<8x1xf32>
    %33 = math.exp %32 : vector<8x1xf32>
    %cst_13 = arith.constant 1.240000e+02 : f32
    %34 = vector.broadcast %cst_13 : f32 to vector<8x1xf32>
    %35 = arith.mulf %34, %33 : vector<8x1xf32>
    %36 = arith.subf %30, %35 : vector<8x1xf32>
    %37 = math.log %36 : vector<8x1xf32>
    %38 = arith.addf %37, %25 : vector<8x1xf32>
    %39 = tpu.iota {dimensions = array<i32: 1>} : vector<8x128xi32>
    %c0_14 = arith.constant 0 : index
    %c0_15 = arith.constant 0 : index
    %40 = vector.load %arg5[%c0_14, %c0_15] : memref<8x1xi32, #tpu.memory_space<vmem>>, vector<8x1xi32>
    %41 = vector.broadcast %40 : vector<8x1xi32> to vector<8x128xi32>
    %42 = arith.cmpi eq, %41, %39 : vector<8x128xi32>
    %43 = arith.extui %42 : vector<8x128xi1> to vector<8x128xi32>
    %44 = arith.sitofp %43 : vector<8x128xi32> to vector<8x128xf32>
    %45 = arith.mulf %15, %44 : vector<8x128xf32>
    %cst_16 = arith.constant dense<0.000000e+00> : vector<8xf32>
    %46 = vector.multi_reduction <add>, %45, %cst_16 [1] : vector<8x128xf32> to vector<8xf32>
    %47 = vector.shape_cast %46 : vector<8xf32> to vector<8x1xf32>
    %48 = arith.subf %38, %47 : vector<8x1xf32>
    %49 = arith.mulf %48, %23 : vector<8x1xf32>
    %50 = vector.shape_cast %49 : vector<8x1xf32> to vector<1x8x1xf32>
    %cst_17 = arith.constant dense<0.000000e+00> : vector<1xf32>
    %51 = vector.multi_reduction <add>, %50, %cst_17 [1, 2] : vector<1x8x1xf32> to vector<1xf32>
    %52 = vector.shape_cast %51 : vector<1xf32> to vector<1x1x1xf32>
    %53 = vector.extract %52[0, 0, 0] : f32 from vector<1x1x1xf32>
    %54 = vector.broadcast %53 : f32 to vector<1x1x1xf32>
    %c0_18 = arith.constant 0 : index
    %c0_19 = arith.constant 0 : index
    %c0_20 = arith.constant 0 : index
    %55 = vector.load %arg7[%c0_18, %c0_19, %c0_20] : memref<1x1x1xf32, #tpu.memory_space<vmem>>, vector<1x1x1xf32>
    tpu.vector_store %arg7[%c0_18, %c0_19, %c0_20], %54 {strides = array<i32>} : memref<1x1x1xf32, #tpu.memory_space<vmem>>, vector<1x1x1xf32>,
    return
  }
  func.func @transform_0(%arg0: i32) -> (i32, i32) {
    %c0_i32 = arith.constant 0 : i32
    %c0_i32_0 = arith.constant 0 : i32
    return %arg0, %c0_i32 : i32, i32
  }
  func.func @transform_1(%arg0: i32) -> (i32, i32) {
    %c0_i32 = arith.constant 0 : i32
    %c0_i32_0 = arith.constant 0 : i32
    %c0_i32_1 = arith.constant 0 : i32
    return %c0_i32, %c0_i32_0 : i32, i32
  }
  func.func @transform_2(%arg0: i32) -> (i32, i32) {
    %c0_i32 = arith.constant 0 : i32
    %c0_i32_0 = arith.constant 0 : i32
    %c0_i32_1 = arith.constant 0 : i32
    return %c0_i32, %c0_i32_0 : i32, i32
  }
  func.func @transform_3(%arg0: i32) -> (i32, i32) {
    %c0_i32 = arith.constant 0 : i32
    %c0_i32_0 = arith.constant 0 : i32
    return %arg0, %c0_i32 : i32, i32
  }
  func.func @transform_4(%arg0: i32) -> (i32, i32) {
    %c0_i32 = arith.constant 0 : i32
    %c0_i32_0 = arith.constant 0 : i32
    return %arg0, %c0_i32 : i32, i32
  }
  func.func @transform_5(%arg0: i32) -> (i32, i32) {
    %c0_i32 = arith.constant 0 : i32
    %c0_i32_0 = arith.constant 0 : i32
    return %arg0, %c0_i32 : i32, i32
  }
  func.func @transform_6(%arg0: i32) -> (i32, i32, i32) {
    %c0_i32 = arith.constant 0 : i32
    %c0_i32_0 = arith.constant 0 : i32
    %c0_i32_1 = arith.constant 0 : i32
    return %arg0, %c0_i32, %c0_i32_0 : i32, i32, i32
  }
}

</mosaic_0001>

<llo_original>
// kernel: tpu_custom_call.1
$region0: #{tpu_custom_call.1}
  #allocation0 [shape = 'u32[]', space=smem, size = 0x4, offset = 0x4, fixed_abs, tag = 'smem constant byte address 0x4 - core index']
  #allocation1 [shape = 'u32[72,128]{1,0:T(1,128)}', space=vmem, size = 0x9000, scoped, tag = 'internal scratch']
  %s0 = inlined_call_operand.hbm [shape: f32[16,768], index: 0, kind: input, shape index: {}]
  %s1 = inlined_call_operand.hbm [shape: bf16[768,128], index: 1, kind: input, shape index: {}]
  %s2 = inlined_call_operand.vmem [shape: f32[1,128], index: 2, kind: input, shape index: {}]
  %s3 = inlined_call_operand.vmem [shape: f32[16,1], index: 3, kind: input, shape index: {}]
  %s4 = inlined_call_operand.vmem [shape: s32[16,1], index: 4, kind: input, shape index: {}]
  %s5 = inlined_call_operand.vmem [shape: f32[16,4], index: 5, kind: output, shape index: {0}]
  %s6 = inlined_call_operand.vmem [shape: f32[2,1,1], index: 6, kind: output, shape index: {1}]
  %7 = xla_tuple %s5, %s6
  %s8 = sld [smem:[#allocation0]]
  $region69: #{tpu_custom_call.1} parent=0
    _
  %s10 = ssub.s32 1, %s8
  %s11 = scalar_select 0, %s10, %s8
  $region1: #{tpu_custom_call.1} parent=0
    #allocation2 [shape = 'u8[49152]{0}', space=vmem, size = 0xc000, scoped, tag = 'input window, operand 0']
    #allocation3 [shape = 's32[2]{0}', space=sflag, size = 0x8, scoped, tag = 'scoped memory for tpu_custom_call.1']
    #allocation4 [shape = 'u8[196608]{0}', space=vmem, size = 0x30000, scoped, tag = 'input window, operand 1, single buffered']
    #allocation5 [shape = 's32[1]{0}', space=sflag, size = 0x4, scoped, tag = 'scoped memory for tpu_custom_call.1']
    %12 = vsyncpa [#allocation3], 0
    %s13 = scalar_lea.sflag [#allocation3], 1
    %14 = vsyncpa %s13, 0
    %15 = vsyncpa [#allocation5], 0
    loop: start=0, step=1, limit=4
    $region2: #{tpu_custom_call.1} parent=1 // loop_pre_header
      _
    $region3: #{tpu_custom_call.1} parent=1 // loop_header
      %s17 = sphi 0, %s21
      %p18 = scmp.ge.s32.totalorder %s17, 4
      %s27 = sphi 0, %s29
      %s30 = sphi 0, %s27
      %s31 = sphi 0, %s30
      %s47 = sphi 0, %s31
      %s51 = sphi 0, %s51
      %s53 = sphi 0, %s51
      %s54 = sphi 0, %s53
      %s68 = sphi 0, %s54
      %s72 = sphi 0, %s72
      %s74 = sphi 0, %s72
      %s75 = sphi 0, %s74
      %s89 = sphi 0, %s75
      %s95 = sphi 0, %s97
      %s98 = sphi 0, %s95
      %s99 = sphi 0, %s98
      %s115 = sphi 0, %s99
      %s121 = sphi 0, %s123
      %s124 = sphi 0, %s121
      %s125 = sphi 0, %s124
      %s141 = sphi 0, %s125
      %s147 = sphi 0, %s149
      %s150 = sphi 0, %s147
      %s151 = sphi 0, %s150
      %s167 = sphi 0, %s151
      %s173 = sphi 0, %s175
      %s176 = sphi 0, %s173
      %s177 = sphi 0, %s176
      %s193 = sphi 0, %s177
    $region4: #{tpu_custom_call.1} parent=1 // loop_header_branch
      %20 = sbr.rel (%p18) target = $region8
    $region5: #{tpu_custom_call.1} parent=1 // loop_body
      %s22 = ssub.s32 %s17, 1
      %s23 = ssub.s32 %s17, 2
      %s24 = sadd.s32 %s17, 1
      %s25 = ssub.s32 %s17, %s24
      %p26 = scmp.eq.s32.totalorder %s25, 0
      %s28 = sadd.s32 %s27, 1
      %s29 = scalar_select %p26, %s27, %s28
      %p32 = pneg %p26
      %p33 = scmp.eq.s32.totalorder %s17, 1
      %p34 = por %p32, %p33
      %p35 = scmp.ne.s32.totalorder %s27, %s30
      %p36 = scmp.eq.s32.totalorder %s17, 0
      %p37 = por %p35, %p36
      %p38 = scmp.ne.s32.totalorder %s27, %s30
      %p39 = scmp.eq.s32.totalorder %s22, 1
      %p40 = por %p38, %p39
      %p41 = scmp.ne.s32.totalorder %s30, %s31
      %p42 = scmp.eq.s32.totalorder %s22, 0
      %p43 = por %p41, %p42
      %p44 = scmp.ne.s32.totalorder %s30, %s31
      %p45 = scmp.eq.s32.totalorder %s23, 1
      %p46 = por %p44, %p45
      %p48 = scmp.ne.s32.totalorder %s31, %s47
      %p49 = scmp.eq.s32.totalorder %s23, 0
      %p50 = por %p48, %p49
      %s52 = sadd.s32 %s51, 1
      %p55 = scmp.eq.s32.totalorder %s17, 1
      %p56 = scmp.ne.s32.totalorder %s51, %s53
      %p57 = scmp.eq.s32.totalorder %s17, 0
      %p58 = por %p56, %p57
      %p59 = scmp.ne.s32.totalorder %s51, %s53
      %p60 = scmp.eq.s32.totalorder %s22, 1
      %p61 = por %p59, %p60
      %p62 = scmp.ne.s32.totalorder %s53, %s54
      %p63 = scmp.eq.s32.totalorder %s22, 0
      %p64 = por %p62, %p63
      %p65 = scmp.ne.s32.totalorder %s53, %s54
      %p66 = scmp.eq.s32.totalorder %s23, 1
      %p67 = por %p65, %p66
      %p69 = scmp.ne.s32.totalorder %s54, %s68
      %p70 = scmp.eq.s32.totalorder %s23, 0
      %p71 = por %p69, %p70
      %s73 = sadd.s32 %s72, 1
      %p76 = scmp.eq.s32.totalorder %s17, 1
      %p77 = scmp.ne.s32.totalorder %s72, %s74
      %p78 = scmp.eq.s32.totalorder %s17, 0
      %p79 = por %p77, %p78
      %p80 = scmp.ne.s32.totalorder %s72, %s74
      %p81 = scmp.eq.s32.totalorder %s22, 1
      %p82 = por %p80, %p81
      %p83 = scmp.ne.s32.totalorder %s74, %s75
      %p84 = scmp.eq.s32.totalorder %s22, 0
      %p85 = por %p83, %p84
      %p86 = scmp.ne.s32.totalorder %s74, %s75
      %p87 = scmp.eq.s32.totalorder %s23, 1
      %p88 = por %p86, %p87
      %p90 = scmp.ne.s32.totalorder %s75, %s89
      %p91 = scmp.eq.s32.totalorder %s23, 0
      %p92 = por %p90, %p91
      %s93 = ssub.s32 %s17, %s24
      %p94 = scmp.eq.s32.totalorder %s93, 0
      %s96 = sadd.s32 %s95, 1
      %s97 = scalar_select %p94, %s95, %s96
      %p100 = pneg %p94
      %p101 = scmp.eq.s32.totalorder %s17, 1
      %p102 = por %p100, %p101
      %p103 = scmp.ne.s32.totalorder %s95, %s98
      %p104 = scmp.eq.s32.totalorder %s17, 0
      %p105 = por %p103, %p104
      %p106 = scmp.ne.s32.totalorder %s95, %s98
      %p107 = scmp.eq.s32.totalorder %s22, 1
      %p108 = por %p106, %p107
      %p109 = scmp.ne.s32.totalorder %s98, %s99
      %p110 = scmp.eq.s32.totalorder %s22, 0
      %p111 = por %p109, %p110
      %p112 = scmp.ne.s32.totalorder %s98, %s99
      %p113 = scmp.eq.s32.totalorder %s23, 1
      %p114 = por %p112, %p113
      %p116 = scmp.ne.s32.totalorder %s99, %s115
      %p117 = scmp.eq.s32.totalorder %s23, 0
      %p118 = por %p116, %p117
      %s119 = ssub.s32 %s17, %s24
      %p120 = scmp.eq.s32.totalorder %s119, 0
      %s122 = sadd.s32 %s121, 1
      %s123 = scalar_select %p120, %s121, %s122
      %p126 = pneg %p120
      %p127 = scmp.eq.s32.totalorder %s17, 1
      %p128 = por %p126, %p127
      %p129 = scmp.ne.s32.totalorder %s121, %s124
      %p130 = scmp.eq.s32.totalorder %s17, 0
      %p131 = por %p129, %p130
      %p132 = scmp.ne.s32.totalorder %s121, %s124
      %p133 = scmp.eq.s32.totalorder %s22, 1
      %p134 = por %p132, %p133
      %p135 = scmp.ne.s32.totalorder %s124, %s125
      %p136 = scmp.eq.s32.totalorder %s22, 0
      %p137 = por %p135, %p136
      %p138 = scmp.ne.s32.totalorder %s124, %s125
      %p139 = scmp.eq.s32.totalorder %s23, 1
      %p140 = por %p138, %p139
      %p142 = scmp.ne.s32.totalorder %s125, %s141
      %p143 = scmp.eq.s32.totalorder %s23, 0
      %p144 = por %p142, %p143
      %s145 = ssub.s32 %s17, %s24
      %p146 = scmp.eq.s32.totalorder %s145, 0
      %s148 = sadd.s32 %s147, 1
      %s149 = scalar_select %p146, %s147, %s148
      %p152 = pneg %p146
      %p153 = scmp.eq.s32.totalorder %s17, 1
      %p154 = por %p152, %p153
      %p155 = scmp.ne.s32.totalorder %s147, %s150
      %p156 = scmp.eq.s32.totalorder %s17, 0
      %p157 = por %p155, %p156
      %p158 = scmp.ne.s32.totalorder %s147, %s150
      %p159 = scmp.eq.s32.totalorder %s22, 1
      %p160 = por %p158, %p159
      %p161 = scmp.ne.s32.totalorder %s150, %s151
      %p162 = scmp.eq.s32.totalorder %s22, 0
      %p163 = por %p161, %p162
      %p164 = scmp.ne.s32.totalorder %s150, %s151
      %p165 = scmp.eq.s32.totalorder %s23, 1
      %p166 = por %p164, %p165
      %p168 = scmp.ne.s32.totalorder %s151, %s167
      %p169 = scmp.eq.s32.totalorder %s23, 0
      %p170 = por %p168, %p169
      %s171 = ssub.s32 %s17, %s24
      %p172 = scmp.eq.s32.totalorder %s171, 0
      %s174 = sadd.s32 %s173, 1
      %s175 = scalar_select %p172, %s173, %s174
      %p178 = pneg %p172
      %p179 = scmp.eq.s32.totalorder %s17, 1
      %p180 = por %p178, %p179
      %p181 = scmp.ne.s32.totalorder %s173, %s176
      %p182 = scmp.eq.s32.totalorder %s17, 0
      %p183 = por %p181, %p182
      %p184 = scmp.ne.s32.totalorder %s173, %s176
      %p185 = scmp.eq.s32.totalorder %s22, 1
      %p186 = por %p184, %p185
      %p187 = scmp.ne.s32.totalorder %s176, %s177
      %p188 = scmp.eq.s32.totalorder %s22, 0
      %p189 = por %p187, %p188
      %p190 = scmp.ne.s32.totalorder %s176, %s177
      %p191 = scmp.eq.s32.totalorder %s23, 1
      %p192 = por %p190, %p191
      %p194 = scmp.ne.s32.totalorder %s177, %s193
      %p195 = scmp.eq.s32.totalorder %s23, 0
      %p196 = por %p194, %p195
      %p197 = scmp.le.s32.totalorder 1, %s17
      %p198 = scmp.lt.s32.totalorder %s17, 3
      %p199 = pnand %p197, %p198
      %p200 = pneg %p199
      // Predicated region
      $region9: #{tpu_custom_call.1} parent=5 // pred_check
        _
      $region10: #{tpu_custom_call.1} parent=5 // pred_check_branch
        %202 = sbr.rel (%p199) target = $region12
      $region11: #{tpu_custom_call.1} parent=5 // pred_region
        %s203 = ssub.s32 %s17, 1
        // Predicated region
        $region13: #{tpu_custom_call.1} parent=11 // pred_check
          %p204 = pneg %p64
        $region14: #{tpu_custom_call.1} parent=11 // pred_check_branch
          %206 = sbr.rel (%p204) target = $region16
        $region15: #{tpu_custom_call.1} parent=11 // pred_region
          %208 = vsyncadd [#allocation5], 0
          %s209 = sshll.u32 %s1, 4
          %s210 = int_to_ptr.hbm [resolvable:$true] %s209
          %s211 = sshll.u32 [#allocation4], 4
          %s212 = int_to_ptr.vmem [resolvable:$true] %s211
          %217 = dma.hbm_to_vmem [thread:$0]  %s210, 6144, %s212, [#allocation5], 64, 64, 4
        $region16: #{tpu_custom_call.1} parent=11 // pred_fallthru
          _
        // Predicated region
        $region17: #{tpu_custom_call.1} parent=11 // pred_check
          %p218 = pneg %p85
        $region18: #{tpu_custom_call.1} parent=11 // pred_check_branch
          %220 = sbr.rel (%p218) target = $region20
        $region19: #{tpu_custom_call.1} parent=11 // pred_region
          _
        $region20: #{tpu_custom_call.1} parent=11 // pred_fallthru
          _
      $region12: #{tpu_custom_call.1} parent=5 // pred_fallthru
        _
      %p221 = scmp.lt.s32.totalorder %s17, 2
      // Predicated region
      $region21: #{tpu_custom_call.1} parent=5 // pred_check
        %p222 = pneg %p221
      $region22: #{tpu_custom_call.1} parent=5 // pred_check_branch
        %224 = sbr.rel (%p222) target = $region24
      $region23: #{tpu_custom_call.1} parent=5 // pred_region
        // Predicated region
        $region25: #{tpu_custom_call.1} parent=23 // pred_check
          %p225 = pneg %p37
        $region26: #{tpu_custom_call.1} parent=23 // pred_check_branch
          %227 = sbr.rel (%p225) target = $region28
        $region27: #{tpu_custom_call.1} parent=23 // pred_region
          %s228 = sand.u32 %s27, 1
          %s229 = scalar_lea.sflag [#allocation3], %s228
          %s230 = sand.u32 %s27, 1
          %s231 = smul.addr %s230, 48
          %s232 = scalar_lea.vmem [#allocation2], %s231
          %234 = vsyncadd %s229, 0
          %s235 = smul.addr %s17, 6
          %s236 = smul.addr %s235, 8
          %s237 = scalar_lea.hbm %s0, %s236
          %s239 = sshll.u32 %s237, 4
          %s240 = int_to_ptr.hbm [resolvable:$true] %s239
          %s241 = sshll.u32 %s232, 4
          %s242 = int_to_ptr.vmem [resolvable:$true] %s241
          %244 = dma.hbm_to_vmem [thread:$0]  %s240, 768, %s242, %s229
        $region28: #{tpu_custom_call.1} parent=23 // pred_fallthru
          _
        // Predicated region
        $region29: #{tpu_custom_call.1} parent=23 // pred_check
          %p245 = pneg %p105
        $region30: #{tpu_custom_call.1} parent=23 // pred_check_branch
          %247 = sbr.rel (%p245) target = $region32
        $region31: #{tpu_custom_call.1} parent=23 // pred_region
          %p248 = scmp.lt.s32.totalorder %s17, 1
          %s249 = scalar_select %p248, %s17, 1
          %s250 = smul.addr %s249, 8
          %s251 = scalar_lea.vmem %s3, %s250
        $region32: #{tpu_custom_call.1} parent=23 // pred_fallthru
          _
        // Predicated region
        $region33: #{tpu_custom_call.1} parent=23 // pred_check
          %p252 = pneg %p131
        $region34: #{tpu_custom_call.1} parent=23 // pred_check_branch
          %254 = sbr.rel (%p252) target = $region36
        $region35: #{tpu_custom_call.1} parent=23 // pred_region
          %p255 = scmp.lt.s32.totalorder %s17, 1
          %s256 = scalar_select %p255, %s17, 1
          %s257 = smul.addr %s256, 8
          %s258 = scalar_lea.vmem %s4, %s257
        $region36: #{tpu_custom_call.1} parent=23 // pred_fallthru
          _
      $region24: #{tpu_custom_call.1} parent=5 // pred_fallthru
        _
      %p259 = scmp.le.s32.totalorder 1, %s17
      %p260 = scmp.lt.s32.totalorder %s17, 3
      %p261 = pnand %p259, %p260
      %p262 = pneg %p261
      // Predicated region
      $region37: #{tpu_custom_call.1} parent=5 // pred_check
        _
      $region38: #{tpu_custom_call.1} parent=5 // pred_check_branch
        %264 = sbr.rel (%p261) target = $region40
      $region39: #{tpu_custom_call.1} parent=5 // pred_region
        %s265 = ssub.s32 %s17, 1
        %s266 = sand.u32 %s30, 1
        %s267 = scalar_lea.sflag [#allocation3], %s266
        %s268 = sand.u32 %s30, 1
        %s269 = smul.addr %s268, 48
        %s270 = scalar_lea.vmem [#allocation2], %s269
        // Predicated region
        $region41: #{tpu_custom_call.1} parent=39 // pred_check
          %p271 = pneg %p43
        $region42: #{tpu_custom_call.1} parent=39 // pred_check_branch
          %273 = sbr.rel (%p271) target = $region44
        $region43: #{tpu_custom_call.1} parent=39 // pred_region
          %275 = dma.done %s267, 768
        $region44: #{tpu_custom_call.1} parent=39 // pred_fallthru
          _
        // Predicated region
        $region45: #{tpu_custom_call.1} parent=39 // pred_check
          %p276 = pneg %p64
        $region46: #{tpu_custom_call.1} parent=39 // pred_check_branch
          %278 = sbr.rel (%p276) target = $region48
        $region47: #{tpu_custom_call.1} parent=39 // pred_region
          %280 = dma.done [#allocation5], 6144
        $region48: #{tpu_custom_call.1} parent=39 // pred_fallthru
          _
        %s281 = sand.u32 %s30, 1
        %s282 = scalar_lea.sflag [#allocation3], %s281
        %s283 = sand.u32 %s30, 1
        %s284 = smul.addr %s283, 48
        %s285 = scalar_lea.vmem [#allocation2], %s284
        %p286 = pneg %p43
        %p287 = pneg %p40
        %p288 = pneg %p64
        %p289 = pneg %p61
        %p290 = pneg %p85
        %p291 = pneg %p82
        %p292 = scmp.lt.s32.totalorder %s22, 1
        %s293 = scalar_select %p292, %s22, 1
        %s294 = smul.addr %s293, 8
        %s295 = scalar_lea.vmem %s3, %s294
        %p296 = pneg %p111
        %p297 = pneg %p108
        %p298 = scmp.lt.s32.totalorder %s22, 1
        %s299 = scalar_select %p298, %s22, 1
        %s300 = smul.addr %s299, 8
        %s301 = scalar_lea.vmem %s4, %s300
        %p302 = pneg %p137
        %p303 = pneg %p134
        %p304 = pneg %p163
        %p305 = pneg %p160
        %p306 = scmp.lt.s32.totalorder %s22, 1
        %s307 = scalar_select %p306, %s22, 1
        %s308 = smul.addr %s307, 8
        %s309 = scalar_lea.vmem %s5, %s308
        %p310 = pneg %p189
        %p311 = pneg %p186
        %p312 = scmp.lt.s32.totalorder %s22, 1
        %s313 = scalar_select %p312, %s22, 1
        %s314 = scalar_lea.vmem %s6, %s313
        %p315 = scmp.lt.s32.totalorder %s22, 1
        %s316 = scalar_select %p315, %s22, 1
        %s317 = smul.addr %s316, 8
        %s318 = scalar_lea.vmem %s3, %s317
        %p319 = scmp.lt.s32.totalorder %s22, 1
        %s320 = scalar_select %p319, %s22, 1
        %s321 = smul.addr %s320, 8
        %s322 = scalar_lea.vmem %s4, %s321
        %p323 = scmp.lt.s32.totalorder %s22, 1
        %s324 = scalar_select %p323, %s22, 1
        %s325 = smul.addr %s324, 8
        %s326 = scalar_lea.vmem %s5, %s325
        %p327 = scmp.lt.s32.totalorder %s22, 1
        %s328 = scalar_select %p327, %s22, 1
        %s329 = scalar_lea.vmem %s6, %s328
        %v330 = vld [vmem:[%s318] sm:$0xff]
        %v331 = vld [vmem:[%s270] sm:$0xff]
        %v332 = vld [vmem:[%s270 + $0x8] sm:$0xff]
        %v333 = vld [vmem:[%s270 + $0x10] sm:$0xff]
        %v334 = vld [vmem:[%s270 + $0x18] sm:$0xff]
        %v335 = vld [vmem:[%s270 + $0x20] sm:$0xff]
        %v336 = vld [vmem:[%s270 + $0x28] sm:$0xff]
        %v337 = vpack.c.bf16 %v331, %v331
        %v338 = vpack.c.bf16 %v332, %v332
        %v339 = vpack.c.bf16 %v333, %v333
        %v340 = vpack.c.bf16 %v334, %v334
        %v341 = vpack.c.bf16 %v335, %v335
        %v342 = vpack.c.bf16 %v336, %v336
        %v343 = vld [vmem:[#allocation4] sm:$0xf]
        %v344 = vld [vmem:[#allocation4 + $0x4] sm:$0xf]
        %v345 = vld [vmem:[#allocation4 + $0x8] sm:$0xf]
        %v346 = vld [vmem:[#allocation4 + $0xc] sm:$0xf]
        %v347 = vld [vmem:[#allocation4 + $0x10] sm:$0xf]
        %v348 = vld [vmem:[#allocation4 + $0x14] sm:$0xf]
        %v349 = vld [vmem:[#allocation4 + $0x18] sm:$0xf]
        %v350 = vld [vmem:[#allocation4 + $0x1c] sm:$0xf]
        %v351 = vld [vmem:[#allocation4 + $0x20] sm:$0xf]
        %v352 = vld [vmem:[#allocation4 + $0x24] sm:$0xf]
        %v353 = vld [vmem:[#allocation4 + $0x28] sm:$0xf]
        %v354 = vld [vmem:[#allocation4 + $0x2c] sm:$0xf]
        %v355 = vld [vmem:[#allocation4 + $0x30] sm:$0xf]
        %v356 = vld [vmem:[#allocation4 + $0x34] sm:$0xf]
        %v357 = vld [vmem:[#allocation4 + $0x38] sm:$0xf]
        %v358 = vld [vmem:[#allocation4 + $0x3c] sm:$0xf]
        %v359 = vld [vmem:[#allocation4 + $0x40] sm:$0xf]
        %v360 = vld [vmem:[#allocation4 + $0x44] sm:$0xf]
        %v361 = vld [vmem:[#allocation4 + $0x48] sm:$0xf]
        %v362 = vld [vmem:[#allocation4 + $0x4c] sm:$0xf]
        %v363 = vld [vmem:[#allocation4 + $0x50] sm:$0xf]
        %v364 = vld [vmem:[#allocation4 + $0x54] sm:$0xf]
        %v365 = vld [vmem:[#allocation4 + $0x58] sm:$0xf]
        %v366 = vld [vmem:[#allocation4 + $0x5c] sm:$0xf]
        %v367 = vld [vmem:[#allocation4 + $0x60] sm:$0xf]
        %v368 = vld [vmem:[#allocation4 + $0x64] sm:$0xf]
        %v369 = vld [vmem:[#allocation4 + $0x68] sm:$0xf]
        %v370 = vld [vmem:[#allocation4 + $0x6c] sm:$0xf]
        %v371 = vld [vmem:[#allocation4 + $0x70] sm:$0xf]
        %v372 = vld [vmem:[#allocation4 + $0x74] sm:$0xf]
        %v373 = vld [vmem:[#allocation4 + $0x78] sm:$0xf]
        %v374 = vld [vmem:[#allocation4 + $0x7c] sm:$0xf]
        %v375 = vld [vmem:[#allocation4 + $0x80] sm:$0xf]
        %v376 = vld [vmem:[#allocation4 + $0x84] sm:$0xf]
        %v377 = vld [vmem:[#allocation4 + $0x88] sm:$0xf]
        %v378 = vld [vmem:[#allocation4 + $0x8c] sm:$0xf]
        %v379 = vld [vmem:[#allocation4 + $0x90] sm:$0xf]
        %v380 = vld [vmem:[#allocation4 + $0x94] sm:$0xf]
        %v381 = vld [vmem:[#allocation4 + $0x98] sm:$0xf]
        %v382 = vld [vmem:[#allocation4 + $0x9c] sm:$0xf]
        %v383 = vld [vmem:[#allocation4 + $0xa0] sm:$0xf]
        %v384 = vld [vmem:[#allocation4 + $0xa4] sm:$0xf]
        %v385 = vld [vmem:[#allocation4 + $0xa8] sm:$0xf]
        %v386 = vld [vmem:[#allocation4 + $0xac] sm:$0xf]
        %v387 = vld [vmem:[#allocation4 + $0xb0] sm:$0xf]
        %v388 = vld [vmem:[#allocation4 + $0xb4] sm:$0xf]
        %v389 = vld [vmem:[#allocation4 + $0xb8] sm:$0xf]
        %v390 = vld [vmem:[#allocation4 + $0xbc] sm:$0xf]
        %v391 = vld [vmem:[#allocation4 + $0xc0] sm:$0xf]
        %v392 = vld [vmem:[#allocation4 + $0xc4] sm:$0xf]
        %v393 = vld [vmem:[#allocation4 + $0xc8] sm:$0xf]
        %v394 = vld [vmem:[#allocation4 + $0xcc] sm:$0xf]
        %v395 = vld [vmem:[#allocation4 + $0xd0] sm:$0xf]
        %v396 = vld [vmem:[#allocation4 + $0xd4] sm:$0xf]
        %v397 = vld [vmem:[#allocation4 + $0xd8] sm:$0xf]
        %v398 = vld [vmem:[#allocation4 + $0xdc] sm:$0xf]
        %v399 = vld [vmem:[#allocation4 + $0xe0] sm:$0xf]
        %v400 = vld [vmem:[#allocation4 + $0xe4] sm:$0xf]
        %v401 = vld [vmem:[#allocation4 + $0xe8] sm:$0xf]
        %v402 = vld [vmem:[#allocation4 + $0xec] sm:$0xf]
        %v403 = vld [vmem:[#allocation4 + $0xf0] sm:$0xf]
        %v404 = vld [vmem:[#allocation4 + $0xf4] sm:$0xf]
        %v405 = vld [vmem:[#allocation4 + $0xf8] sm:$0xf]
        %v406 = vld [vmem:[#allocation4 + $0xfc] sm:$0xf]
        %v407 = vld [vmem:[#allocation4 + $0x100] sm:$0xf]
        %v408 = vld [vmem:[#allocation4 + $0x104] sm:$0xf]
        %v409 = vld [vmem:[#allocation4 + $0x108] sm:$0xf]
        %v410 = vld [vmem:[#allocation4 + $0x10c] sm:$0xf]
        %v411 = vld [vmem:[#allocation4 + $0x110] sm:$0xf]
        %v412 = vld [vmem:[#allocation4 + $0x114] sm:$0xf]
        %v413 = vld [vmem:[#allocation4 + $0x118] sm:$0xf]
        %v414 = vld [vmem:[#allocation4 + $0x11c] sm:$0xf]
        %v415 = vld [vmem:[#allocation4 + $0x120] sm:$0xf]
        %v416 = vld [vmem:[#allocation4 + $0x124] sm:$0xf]
        %v417 = vld [vmem:[#allocation4 + $0x128] sm:$0xf]
        %v418 = vld [vmem:[#allocation4 + $0x12c] sm:$0xf]
        %v419 = vld [vmem:[#allocation4 + $0x130] sm:$0xf]
        %v420 = vld [vmem:[#allocation4 + $0x134] sm:$0xf]
        %v421 = vld [vmem:[#allocation4 + $0x138] sm:$0xf]
        %v422 = vld [vmem:[#allocation4 + $0x13c] sm:$0xf]
        %v423 = vld [vmem:[#allocation4 + $0x140] sm:$0xf]
        %v424 = vld [vmem:[#allocation4 + $0x144] sm:$0xf]
        %v425 = vld [vmem:[#allocation4 + $0x148] sm:$0xf]
        %v426 = vld [vmem:[#allocation4 + $0x14c] sm:$0xf]
        %v427 = vld [vmem:[#allocation4 + $0x150] sm:$0xf]
        %v428 = vld [vmem:[#allocation4 + $0x154] sm:$0xf]
        %v429 = vld [vmem:[#allocation4 + $0x158] sm:$0xf]
        %v430 = vld [vmem:[#allocation4 + $0x15c] sm:$0xf]
        %v431 = vld [vmem:[#allocation4 + $0x160] sm:$0xf]
        %v432 = vld [vmem:[#allocation4 + $0x164] sm:$0xf]
        %v433 = vld [vmem:[#allocation4 + $0x168] sm:$0xf]
        %v434 = vld [vmem:[#allocation4 + $0x16c] sm:$0xf]
        %v435 = vld [vmem:[#allocation4 + $0x170] sm:$0xf]
        %v436 = vld [vmem:[#allocation4 + $0x174] sm:$0xf]
        %v437 = vld [vmem:[#allocation4 + $0x178] sm:$0xf]
        %v438 = vld [vmem:[#allocation4 + $0x17c] sm:$0xf]
        %v535 = vunpack.c.l.b16 %v343
        %v536 = vunpack.c.l.b16 %v344
        %v537 = vunpack.c.l.b16 %v345
        %v538 = vunpack.c.l.b16 %v346
        %v539 = vunpack.c.l.b16 %v347
        %v540 = vunpack.c.l.b16 %v348
        %v541 = vunpack.c.l.b16 %v349
        %v542 = vunpack.c.l.b16 %v350
        %v543 = vunpack.c.l.b16 %v351
        %v544 = vunpack.c.l.b16 %v352
        %v545 = vunpack.c.l.b16 %v353
        %v546 = vunpack.c.l.b16 %v354
        %v547 = vunpack.c.l.b16 %v355
        %v548 = vunpack.c.l.b16 %v356
        %v549 = vunpack.c.l.b16 %v357
        %v550 = vunpack.c.l.b16 %v358
        %v551 = vunpack.c.l.b16 %v359
        %v552 = vunpack.c.l.b16 %v360
        %v553 = vunpack.c.l.b16 %v361
        %v554 = vunpack.c.l.b16 %v362
        %v555 = vunpack.c.l.b16 %v363
        %v556 = vunpack.c.l.b16 %v364
        %v557 = vunpack.c.l.b16 %v365
        %v558 = vunpack.c.l.b16 %v366
        %v559 = vunpack.c.l.b16 %v367
        %v560 = vunpack.c.l.b16 %v368
        %v561 = vunpack.c.l.b16 %v369
        %v562 = vunpack.c.l.b16 %v370
        %v563 = vunpack.c.l.b16 %v371
        %v564 = vunpack.c.l.b16 %v372
        %v565 = vunpack.c.l.b16 %v373
        %v566 = vunpack.c.l.b16 %v374
        %v567 = vunpack.c.l.b16 %v375
        %v568 = vunpack.c.l.b16 %v376
        %v569 = vunpack.c.l.b16 %v377
        %v570 = vunpack.c.l.b16 %v378
        %v571 = vunpack.c.l.b16 %v379
        %v572 = vunpack.c.l.b16 %v380
        %v573 = vunpack.c.l.b16 %v381
        %v574 = vunpack.c.l.b16 %v382
        %v575 = vunpack.c.l.b16 %v383
        %v576 = vunpack.c.l.b16 %v384
        %v577 = vunpack.c.l.b16 %v385
        %v578 = vunpack.c.l.b16 %v386
        %v579 = vunpack.c.l.b16 %v387
        %v580 = vunpack.c.l.b16 %v388
        %v581 = vunpack.c.l.b16 %v389
        %v582 = vunpack.c.l.b16 %v390
        %v583 = vunpack.c.l.b16 %v391
        %v584 = vunpack.c.l.b16 %v392
        %v585 = vunpack.c.l.b16 %v393
        %v586 = vunpack.c.l.b16 %v394
        %v587 = vunpack.c.l.b16 %v395
        %v588 = vunpack.c.l.b16 %v396
        %v589 = vunpack.c.l.b16 %v397
        %v590 = vunpack.c.l.b16 %v398
        %v591 = vunpack.c.l.b16 %v399
        %v592 = vunpack.c.l.b16 %v400
        %v593 = vunpack.c.l.b16 %v401
        %v594 = vunpack.c.l.b16 %v402
        %v595 = vunpack.c.l.b16 %v403
        %v596 = vunpack.c.l.b16 %v404
        %v597 = vunpack.c.l.b16 %v405
        %v598 = vunpack.c.l.b16 %v406
        %v599 = vunpack.c.l.b16 %v407
        %v600 = vunpack.c.l.b16 %v408
        %v601 = vunpack.c.l.b16 %v409
        %v602 = vunpack.c.l.b16 %v410
        %v603 = vunpack.c.l.b16 %v411
        %v604 = vunpack.c.l.b16 %v412
        %v605 = vunpack.c.l.b16 %v413
        %v606 = vunpack.c.l.b16 %v414
        %v607 = vunpack.c.l.b16 %v415
        %v608 = vunpack.c.l.b16 %v416
        %v609 = vunpack.c.l.b16 %v417
        %v610 = vunpack.c.l.b16 %v418
        %v611 = vunpack.c.l.b16 %v419
        %v612 = vunpack.c.l.b16 %v420
        %v613 = vunpack.c.l.b16 %v421
        %v614 = vunpack.c.l.b16 %v422
        %v615 = vunpack.c.l.b16 %v423
        %v616 = vunpack.c.l.b16 %v424
        %v617 = vunpack.c.l.b16 %v425
        %v618 = vunpack.c.l.b16 %v426
        %v619 = vunpack.c.l.b16 %v427
        %v620 = vunpack.c.l.b16 %v428
        %v621 = vunpack.c.l.b16 %v429
        %v622 = vunpack.c.l.b16 %v430
        %v623 = vunpack.c.l.b16 %v431
        %v624 = vunpack.c.l.b16 %v432
        %v625 = vunpack.c.l.b16 %v433
        %v626 = vunpack.c.l.b16 %v434
        %v627 = vunpack.c.l.b16 %v435
        %v628 = vunpack.c.l.b16 %v436
        %v629 = vunpack.c.l.b16 %v437
        %v630 = vunpack.c.l.b16 %v438
        %v631 = vpack.c.b16 %v536, %v535
        %v632 = vpack.c.b16 %v538, %v537
        %v633 = vpack.c.b16 %v540, %v539
        %v634 = vpack.c.b16 %v542, %v541
        %v635 = vpack.c.b16 %v544, %v543
        %v636 = vpack.c.b16 %v546, %v545
        %v637 = vpack.c.b16 %v548, %v547
        %v638 = vpack.c.b16 %v550, %v549
        %v639 = vpack.c.b16 %v552, %v551
        %v640 = vpack.c.b16 %v554, %v553
        %v641 = vpack.c.b16 %v556, %v555
        %v642 = vpack.c.b16 %v558, %v557
        %v643 = vpack.c.b16 %v560, %v559
        %v644 = vpack.c.b16 %v562, %v561
        %v645 = vpack.c.b16 %v564, %v563
        %v646 = vpack.c.b16 %v566, %v565
        %v647 = vpack.c.b16 %v568, %v567
        %v648 = vpack.c.b16 %v570, %v569
        %v649 = vpack.c.b16 %v572, %v571
        %v650 = vpack.c.b16 %v574, %v573
        %v651 = vpack.c.b16 %v576, %v575
        %v652 = vpack.c.b16 %v578, %v577
        %v653 = vpack.c.b16 %v580, %v579
        %v654 = vpack.c.b16 %v582, %v581
        %v655 = vpack.c.b16 %v584, %v583
        %v656 = vpack.c.b16 %v586, %v585
        %v657 = vpack.c.b16 %v588, %v587
        %v658 = vpack.c.b16 %v590, %v589
        %v659 = vpack.c.b16 %v592, %v591
        %v660 = vpack.c.b16 %v594, %v593
        %v661 = vpack.c.b16 %v596, %v595
        %v662 = vpack.c.b16 %v598, %v597
        %v663 = vpack.c.b16 %v600, %v599
        %v664 = vpack.c.b16 %v602, %v601
        %v665 = vpack.c.b16 %v604, %v603
        %v666 = vpack.c.b16 %v606, %v605
        %v667 = vpack.c.b16 %v608, %v607
        %v668 = vpack.c.b16 %v610, %v609
        %v669 = vpack.c.b16 %v612, %v611
        %v670 = vpack.c.b16 %v614, %v613
        %v671 = vpack.c.b16 %v616, %v615
        %v672 = vpack.c.b16 %v618, %v617
        %v673 = vpack.c.b16 %v620, %v619
        %v674 = vpack.c.b16 %v622, %v621
        %v675 = vpack.c.b16 %v624, %v623
        %v676 = vpack.c.b16 %v626, %v625
        %v677 = vpack.c.b16 %v628, %v627
        %v678 = vpack.c.b16 %v630, %v629
        %727 = vmatpush.bf16.msra.mxu0 %v638
        %728 = vmatpush.bf16.msra.mxu0 %v637
        %729 = vmatpush.bf16.msra.mxu0 %v636
        %730 = vmatpush.bf16.msra.mxu0 %v635
        %731 = vmatpush.bf16.msra.mxu0 %v634
        %732 = vmatpush.bf16.msra.mxu0 %v633
        %733 = vmatpush.bf16.msra.mxu0 %v632
        %734 = vmatpush.bf16.msra.mxu0 %v631
        %735 = vmatmul.bf16.gmra.mxu0 %v337
        %v736 = vpop.f32.mrf.mxu0
        %v737 = vadd.f32 0.0, %v736
        %v738 = vpop.f32.mrf.mxu0
        %739 = vdwg.mxu0
        %740 = vmatpush.bf16.msra.mxu0 %v646
        %741 = vmatpush.bf16.msra.mxu0 %v645
        %742 = vmatpush.bf16.msra.mxu0 %v644
        %743 = vmatpush.bf16.msra.mxu0 %v643
        %744 = vmatpush.bf16.msra.mxu0 %v642
        %745 = vmatpush.bf16.msra.mxu0 %v641
        %746 = vmatpush.bf16.msra.mxu0 %v640
        %747 = vmatpush.bf16.msra.mxu0 %v639
        %748 = vmatmul.bf16.gmra.mxu0 %v338
        %v749 = vpop.f32.mrf.mxu0
        %v750 = vadd.f32 %v737, %v749
        %v751 = vpop.f32.mrf.mxu0
        %752 = vdwg.mxu0
        %753 = vmatpush.bf16.msra.mxu0 %v654
        %754 = vmatpush.bf16.msra.mxu0 %v653
        %755 = vmatpush.bf16.msra.mxu0 %v652
        %756 = vmatpush.bf16.msra.mxu0 %v651
        %757 = vmatpush.bf16.msra.mxu0 %v650
        %758 = vmatpush.bf16.msra.mxu0 %v649
        %759 = vmatpush.bf16.msra.mxu0 %v648
        %760 = vmatpush.bf16.msra.mxu0 %v647
        %761 = vmatmul.bf16.gmra.mxu0 %v339
        %v762 = vpop.f32.mrf.mxu0
        %v763 = vadd.f32 %v750, %v762
        %v764 = vpop.f32.mrf.mxu0
        %765 = vdwg.mxu0
        %766 = vmatpush.bf16.msra.mxu0 %v662
        %767 = vmatpush.bf16.msra.mxu0 %v661
        %768 = vmatpush.bf16.msra.mxu0 %v660
        %769 = vmatpush.bf16.msra.mxu0 %v659
        %770 = vmatpush.bf16.msra.mxu0 %v658
        %771 = vmatpush.bf16.msra.mxu0 %v657
        %772 = vmatpush.bf16.msra.mxu0 %v656
        %773 = vmatpush.bf16.msra.mxu0 %v655
        %774 = vmatmul.bf16.gmra.mxu0 %v340
        %v775 = vpop.f32.mrf.mxu0
        %v776 = vadd.f32 %v763, %v775
        %v777 = vpop.f32.mrf.mxu0
        %778 = vdwg.mxu0
        %779 = vmatpush.bf16.msra.mxu0 %v670
        %780 = vmatpush.bf16.msra.mxu0 %v669
        %781 = vmatpush.bf16.msra.mxu0 %v668
        %782 = vmatpush.bf16.msra.mxu0 %v667
        %783 = vmatpush.bf16.msra.mxu0 %v666
        %784 = vmatpush.bf16.msra.mxu0 %v665
        %785 = vmatpush.bf16.msra.mxu0 %v664
        %786 = vmatpush.bf16.msra.mxu0 %v663
        %787 = vmatmul.bf16.gmra.mxu0 %v341
        %v788 = vpop.f32.mrf.mxu0
        %v789 = vadd.f32 %v776, %v788
        %v790 = vpop.f32.mrf.mxu0
        %791 = vdwg.mxu0
        %792 = vmatpush.bf16.msra.mxu0 %v678
        %793 = vmatpush.bf16.msra.mxu0 %v677
        %794 = vmatpush.bf16.msra.mxu0 %v676
        %795 = vmatpush.bf16.msra.mxu0 %v675
        %796 = vmatpush.bf16.msra.mxu0 %v674
        %797 = vmatpush.bf16.msra.mxu0 %v673
        %798 = vmatpush.bf16.msra.mxu0 %v672
        %799 = vmatpush.bf16.msra.mxu0 %v671
        %800 = vmatmul.bf16.gmra.mxu0 %v342
        %v801 = vpop.f32.mrf.mxu0
        %v802 = vadd.f32 %v789, %v801
        %v803 = vpop.f32.mrf.mxu0
        %804 = vdwg.mxu0
        %806 = vset.pattern.permute.xlu0 0
        %807 = vperm.xlu0 %806, %v330
        %v808 = vpop.permute.xlu0 %807
        %v810 = vmul.f32 %v802, %v808
        %v811 = vld [vmem:[%s2] sm:$0x1]
        %v813 = vperm.slane %v811, 0
        %v815 = vadd.f32 %v810, %v813
        %v816 = vmax.f32 %v815, 0.0
        %vm817 = vcmask 31744
        %818 = vst.msk [vmem:[%s326] sm:$0xff] %vm817, %v816
        %v819 = vmul.f32 %v816, %v808
        %s820 = smul.u32 %s22, 8
        %v821 = vlaneseq
        %v822 = vshrl.u32 %v821, 7
        %v823 = vstv %s820
        %v824 = vadd.s32 %v823, %v822
        %vm825 = vcmp.lt.s32.totalorder %v824, 16
        %v826 = vsel %vm825, 1, 0
        %v827 = vcvt.s32.f32 %v826
        %828 = vmax.xlane.f32.xlu0 %v819
        %v829 = vpop.xlane.xlu0 %828
        %v830 = vsub.f32 %v819, %v829
        %v831 = vmul.f32 %v830, 1.442695
        %v832 = vpow.pop %v831
        %833 = vadd.xlane.f32.xlu0 %v832
        %v834 = vpop.xlane.xlu0 %833
        %v835 = vsub.f32 0.0, %v829
        %v836 = vmul.f32 %v835, 1.442695
        %v837 = vpow.pop %v836
        %v838 = vmul.f32 %v837, 124.0
        %v839 = vsub.f32 %v834, %v838
        %v840 = vlog2.pop %v839
        %v841 = vmul.f32 %v840, 0.6931472
        %v842 = vadd.f32 %v841, %v829
        %v843 = vlaneseq
        %v844 = vand.u32 %v843, 127
        %v845 = vld [vmem:[%s322] sm:$0xff]
        %846 = vset.pattern.permute.xlu0 0
        %847 = vperm.xlu0 %846, %v845
        %v848 = vpop.permute.xlu0 %847
        %vm849 = vcmp.eq.s32.totalorder %v848, %v844
        %v850 = vsel %vm849, 1, 0
        %v851 = vcvt.s32.f32 %v850
        %v852 = vmul.f32 %v819, %v851
        %853 = vadd.xlane.f32.xlu0 %v852
        %v854 = vpop.xlane.xlu0 %853
        %v855 = vsub.f32 %v842, %v854
        %v856 = vmul.f32 %v855, %v827
        %vm857 = vcmask 7168
        %v858 = vsel %vm857, %v856, 0.0
        %859 = vadd.xlane.f32.xlu0 %v858
        %v860 = vpop.xlane.xlu0 %859
        %v861 = vrot.slane %v860, 4
        %v862 = vadd.f32 %v860, %v861
        %v863 = vrot.slane %v862, 2
        %v864 = vadd.f32 %v862, %v863
        %v865 = vrot.slane %v864, 1
        %v866 = vadd.f32 %v864, %v865
        %s867 = vtos %v866
        %v868 = vstv %s867
        %vm869 = vcmask 0
        %870 = vst.msk [vmem:[%s329] sm:$0x1] %vm869, %v868
        %p871 = scmp.lt.s32.totalorder %s22, 1
        %s872 = scalar_select %p871, %s22, 1
        %s873 = smul.addr %s872, 8
        %s874 = scalar_lea.vmem %s5, %s873
        %p875 = scmp.lt.s32.totalorder %s22, 1
        %s876 = scalar_select %p875, %s22, 1
        %s877 = scalar_lea.vmem %s6, %s876
        // Predicated region
        $region49: #{tpu_custom_call.1} parent=39 // pred_check
          %p878 = pneg %p160
        $region50: #{tpu_custom_call.1} parent=39 // pred_check_branch
          %880 = sbr.rel (%p878) target = $region52
        $region51: #{tpu_custom_call.1} parent=39 // pred_region
          _
        $region52: #{tpu_custom_call.1} parent=39 // pred_fallthru
          _
        // Predicated region
        $region53: #{tpu_custom_call.1} parent=39 // pred_check
          %p881 = pneg %p186
        $region54: #{tpu_custom_call.1} parent=39 // pred_check_branch
          %883 = sbr.rel (%p881) target = $region56
        $region55: #{tpu_custom_call.1} parent=39 // pred_region
          _
        $region56: #{tpu_custom_call.1} parent=39 // pred_fallthru
          _
      $region40: #{tpu_custom_call.1} parent=5 // pred_fallthru
        _
      %p884 = scmp.le.s32.totalorder 2, %s17
      // Predicated region
      $region57: #{tpu_custom_call.1} parent=5 // pred_check
        %p885 = pneg %p884
      $region58: #{tpu_custom_call.1} parent=5 // pred_check_branch
        %887 = sbr.rel (%p885) target = $region60
      $region59: #{tpu_custom_call.1} parent=5 // pred_region
        %s888 = ssub.s32 %s17, 2
        // Predicated region
        $region61: #{tpu_custom_call.1} parent=59 // pred_check
          %p889 = pneg %p166
        $region62: #{tpu_custom_call.1} parent=59 // pred_check_branch
          %891 = sbr.rel (%p889) target = $region64
        $region63: #{tpu_custom_call.1} parent=59 // pred_region
          %p892 = scmp.lt.s32.totalorder %s23, 1
          %s893 = scalar_select %p892, %s23, 1
          %s894 = smul.addr %s893, 8
          %s895 = scalar_lea.vmem %s5, %s894
        $region64: #{tpu_custom_call.1} parent=59 // pred_fallthru
          _
        // Predicated region
        $region65: #{tpu_custom_call.1} parent=59 // pred_check
          %p896 = pneg %p192
        $region66: #{tpu_custom_call.1} parent=59 // pred_check_branch
          %898 = sbr.rel (%p896) target = $region68
        $region67: #{tpu_custom_call.1} parent=59 // pred_region
          %p899 = scmp.lt.s32.totalorder %s23, 1
          %s900 = scalar_select %p899, %s23, 1
          %s901 = scalar_lea.vmem %s6, %s900
        $region68: #{tpu_custom_call.1} parent=59 // pred_fallthru
          _
      $region60: #{tpu_custom_call.1} parent=5 // pred_fallthru
        _
    $region6: #{tpu_custom_call.1} parent=1 // loop_footer
      %s21 = sadd.s32 1, %s17
    $region7: #{tpu_custom_call.1} parent=1 // loop_footer_branch
      %16 = sbr.rel target = $region3
    $region8: #{tpu_custom_call.1} parent=1 // loop_exit
      _
    %902 = vsyncpa [#allocation3], 1
    %s903 = scalar_lea.sflag [#allocation3], 1
    %904 = vsyncpa %s903, 1
    %905 = vsyncpa [#allocation5], 1

</llo_original>
